<compile_context>
chip_gen: v7x
topology: tpu7x:2x2x1
jax: 0.10.0
libtpu: 0.0.40
codegen_flags: <defaults>
</compile_context>

<pallas_src>
import functools

import jax
import jax.numpy as jnp
from jax import lax
from jax.experimental import pallas as pl
from jax.experimental.pallas import tpu as pltpu

NEG_MASK = -1.0e6   # value assigned to masked (infeasible) offline nodes
NEG_SKIP = -1.0e5   # value assigned to the skip/dummy node (index 0)


def _round_up(x, m):
    return m * ((x + m - 1) // m)


def _balance_kernel(w_ref, orig_ref, negsize_ref, seq_ref, budget_ref, *, unroll):
    """One (batch-block, V-chunk) grid step of the Balance rollout.

    w_ref      : (TV, TB, U)  float32   bids of arriving nodes in this chunk
    orig_ref   : (TB, U)      float32   original budgets (index 0 = dummy)
    negsize_ref: (TB, 1)      float32   output: -total matched weight
    seq_ref    : (TB, TV)     int32     output: selected offline node per step
    budget_ref : (TB, U)      float32   scratch: current budgets (persists over V-chunks)
    """
    TV, TB, U = w_ref.shape
    v_blk = pl.program_id(1)
    nv = pl.num_programs(1)

    @pl.when(v_blk == 0)
    def _init():
        budget_ref[...] = orig_ref[...]

    # Loop-invariant values, hoisted once per V-chunk.
    orig = orig_ref[...]                                          # (TB, U)
    inv_orig = 1.0 / orig                                         # (TB, U)
    u_idx = lax.broadcasted_iota(jnp.int32, (TB, U), 1)           # offline-node ids
    skip = (u_idx == 0)                                           # dummy/skip column
    col_idx = lax.broadcasted_iota(jnp.int32, (TB, TV), 1)        # local step ids

    def step(i, carry):
        curr, seq = carry
        w_v = w_ref[i]                                            # (TB, U)

        # Infeasible: no edge (bid == 0) or bid exceeds remaining budget.
        infeasible = jnp.logical_or(w_v <= 0.0, w_v > curr)
        frac = jnp.where(infeasible, NEG_MASK, curr * inv_orig)
        frac = jnp.where(skip, NEG_SKIP, frac)

        # argmax over U with first-index tie-break (two reduces; argmax_p does
        # not lower on Mosaic).
        max_val = jnp.max(frac, axis=-1, keepdims=True)           # (TB, 1)
        sel = jnp.min(jnp.where(frac == max_val, u_idx, U),
                      axis=-1, keepdims=True)                     # (TB, 1)

        picked = (u_idx == sel)                                   # (TB, U)
        curr = jnp.where(picked, curr - w_v, curr)
        seq = jnp.where(col_idx == i, sel, seq)                   # register-carried
        return curr, seq

    init = (budget_ref[...], jnp.zeros((TB, TV), jnp.int32))
    curr, seq = lax.fori_loop(0, TV, step, init, unroll=unroll)

    # Flush carried state / picks once per V-chunk (lane-dense stores).
    budget_ref[...] = curr
    seq_ref[...] = seq

    @pl.when(v_blk == nv - 1)
    def _finalize():
        # Budget decrease == matched weight, so -size = sum(curr_final - orig).
        negsize_ref[...] = jnp.sum(curr - orig, axis=-1, keepdims=True)


def _query_hw():
    """Best-effort hardware query; safe fallbacks if unavailable."""
    vmem_cap = 64 * 1024 * 1024          # conservative default (v7x per-core VMEM)
    two_cores = False
    try:
        info = pltpu.get_tpu_info()
        vmem_cap = int(getattr(info, "vmem_capacity_bytes", vmem_cap))
    except Exception:
        pass
    try:
        kind = jax.devices()[0].device_kind.lower()
        # Chips with 2 TensorCores visible to one device (megacore / v7x).
        two_cores = ("v4" in kind) or ("v5p" in kind) or ("7" in kind)
    except Exception:
        pass
    return vmem_cap, two_cores


def balance_forward(bids_buv, orig_budget):
    """Runs the Balance heuristic.

    bids_buv    : (B, U, V) float32, U = u_size + 1 (row 0 is the dummy/skip
                  node and must have zero-weight edges).
    orig_budget : (B, U)    float32, strictly positive (index 0 = dummy).

    Returns (-size, sequences, None) mirroring the PyTorch module's return.
    """
    B, U, V = bids_buv.shape
    bids_buv = bids_buv.astype(jnp.float32)
    orig_budget = orig_budget.astype(jnp.float32)

    vmem_cap, two_cores = _query_hw()

    # ---- tile-size selection -------------------------------------------------
    U_pad = _round_up(U, 128)                 # offline nodes on lanes
    B_pad8 = _round_up(B, 8)
    vregs_per_group = U_pad // 128            # vregs per 8 batch rows per (TB,U) tile

    # Batch tile: several independent 8-row vreg groups per step (latency
    # hiding), scaled down for large U to keep vreg pressure in check.
    tb_from_pressure = max(8, ((32 // vregs_per_group) // 8) * 8)
    TB = min(32, tb_from_pressure, B_pad8)
    # On 2-TensorCore chips keep >= 2 batch blocks so the 'parallel' axis
    # actually spans both cores (no effect on v5e/v6e with 1 TC).
    if two_cores and B_pad8 >= 16:
        TB = min(TB, max(8, ((B_pad8 // 2) // 8) * 8))
    B_pad = _round_up(B, TB)

    # V chunk: 128 lanes -> lane-dense seq stores and a small (TB,128) carried
    # seq chunk flushed once per chunk (per review suggestion).
    TV = 128 if V >= 128 else V
    V_pad = _round_up(V, TV)

    # Unroll: keep live vregs * unroll well under the 64-vreg file.
    work_vregs = (TB // 8) * vregs_per_group
    unroll = 8 if work_vregs <= 1 else (4 if work_vregs <= 2 else 2)
    while unroll > 1 and TV % unroll != 0:
        unroll //= 2
    unroll = max(unroll, 1)

    # ---- padding -------------------------------------------------------------
    # Padded offline columns get bid=0 / budget=1 -> always masked; padded
    # batch rows / padded V steps always pick the skip node (zero weight).
    bids = jnp.pad(bids_buv,
                   ((0, B_pad - B), (0, U_pad - U), (0, V_pad - V)))
    orig = jnp.pad(orig_budget,
                   ((0, B_pad - B), (0, U_pad - U)), constant_values=1.0)

    # Kernel layout (V, B, U): per-step slice w_ref[i] is a lane-dense
    # (TB, U_pad) tile.  The transpose is one extra HBM pass, accepted
    # knowingly (dwarfed by the serial per-step compute).
    bids_vbu = jnp.transpose(bids, (2, 0, 1))

    nb = B_pad // TB
    nv = V_pad // TV

    grid_spec = pltpu.PrefetchScalarGridSpec(
        num_scalar_prefetch=0,
        grid=(nb, nv),
        in_specs=[
            pl.BlockSpec((TV, TB, U_pad), lambda b, v: (v, b, 0)),
            pl.BlockSpec((TB, U_pad), lambda b, v: (b, 0)),
        ],
        out_specs=[
            pl.BlockSpec((TB, 1), lambda b, v: (b, 0)),
            pl.BlockSpec((TB, TV), lambda b, v: (b, v)),
        ],
        scratch_shapes=[
            pltpu.VMEM((TB, U_pad), jnp.float32),   # curr_budget (persistent)
        ],
    )

    # VMEM budget derived from the actual blocks (double-buffered inputs /
    # outputs + persistent scratch), with margin, capped by queried capacity.
    bids_block = TV * TB * U_pad * 4
    orig_block = TB * U_pad * 4
    seq_block = TB * TV * 4
    need = 2 * bids_block + 2 * orig_block + 2 * seq_block + 2 * TB * 4 \
        + TB * U_pad * 4
    vmem_limit = int(min(vmem_cap * 3 // 4, max(8 * 1024 * 1024, 3 * need)))
    vmem_limit = max(vmem_limit, need + (2 << 20))

    neg_size, sequences = pl.pallas_call(
        functools.partial(_balance_kernel, unroll=unroll),
        out_shape=(
            jax.ShapeDtypeStruct((B_pad, 1), jnp.float32),
            jax.ShapeDtypeStruct((B_pad, V_pad), jnp.int32),
        ),
        grid_spec=grid_spec,
        compiler_params=pltpu.CompilerParams(
            dimension_semantics=("parallel", "arbitrary"),
            vmem_limit_bytes=vmem_limit),
    )(bids_vbu, orig)

    return neg_size[:B, 0], sequences[:B, :V], None


if __name__ == "__main__":
    key = jax.random.PRNGKey(0)
    B, u_size, v_size = 2, 8, 8
    U = u_size + 1                      # +1 for the dummy / skip node at index 0

    k1, k2, k3 = jax.random.split(key, 3)
    bids = jax.random.uniform(k1, (B, U, v_size), dtype=jnp.float32)
    edge = (jax.random.uniform(k2, (B, U, v_size)) > 0.3).astype(jnp.float32)
    bids = bids * edge
    bids = bids.at[:, 0, :].set(0.0)    # dummy node has zero-weight edges

    orig_budget = jax.random.uniform(
        k3, (B, U), minval=0.5, maxval=2.0, dtype=jnp.float32)
    orig_budget = orig_budget.at[:, 0].set(1.0)   # dummy budget (never consumed)

    neg_size, sequences, _ = balance_forward(bids, orig_budget)
    jax.block_until_ready((neg_size, sequences))
    print("KERNEL_OK")
</pallas_src>

<mosaic_0001>
module attributes {stable_mosaic.version = 11 : i64} {
  func.func @_balance_kernel(%arg0: i32, %arg1: i32, %arg2: memref<8x8x128xf32, #tpu.memory_space<vmem>>, %arg3: memref<8x128xf32, #tpu.memory_space<vmem>>, %arg4: memref<8x1xf32, #tpu.memory_space<vmem>>, %arg5: memref<8x8xi32, #tpu.memory_space<vmem>>, %arg6: memref<8x128xf32, #tpu.memory_space<vmem>>) attributes {dimension_semantics = [#tpu.dimension_semantics<parallel>, #tpu.dimension_semantics<arbitrary>], iteration_bounds = array<i64: 1, 1>, scalar_prefetch = 0 : i64, scratch_operands = 1 : i64, tpu.core_type = #tpu.core_type<tc>, window_params = [{transform_indices = @transform_0, window_bounds = array<i64: 8, 8, 128>}, {transform_indices = @transform_1, window_bounds = array<i64: 8, 128>}, {transform_indices = @transform_2, window_bounds = array<i64: 8, 1>}, {transform_indices = @transform_3, window_bounds = array<i64: 8, 8>}]} {
    %c0_i32 = arith.constant 0 : i32
    %0 = arith.cmpi eq, %arg1, %c0_i32 : i32
    %1 = arith.extui %0 : i1 to i32
    %c0_i32_0 = arith.constant 0 : i32
    %2 = arith.cmpi ne, %1, %c0_i32_0 : i32
    scf.if %2 {
      %c0_76 = arith.constant 0 : index
      %c0_77 = arith.constant 0 : index
      %249 = vector.load %arg3[%c0_76, %c0_77] : memref<8x128xf32, #tpu.memory_space<vmem>>, vector<8x128xf32>
      %c0_78 = arith.constant 0 : index
      %c0_79 = arith.constant 0 : index
      %250 = vector.load %arg6[%c0_78, %c0_79] : memref<8x128xf32, #tpu.memory_space<vmem>>, vector<8x128xf32>
      tpu.vector_store %arg6[%c0_78, %c0_79], %249 {strides = array<i32>} : memref<8x128xf32, #tpu.memory_space<vmem>>, vector<8x128xf32>,
    } else {
    }
    %c0 = arith.constant 0 : index
    %c0_1 = arith.constant 0 : index
    %3 = vector.load %arg3[%c0, %c0_1] : memref<8x128xf32, #tpu.memory_space<vmem>>, vector<8x128xf32>
    %cst = arith.constant 1.000000e+00 : f32
    %4 = vector.broadcast %cst : f32 to vector<8x128xf32>
    %5 = arith.divf %4, %3 : vector<8x128xf32>
    %6 = tpu.iota {dimensions = array<i32: 1>} : vector<8x128xi32>
    %c0_i32_2 = arith.constant 0 : i32
    %7 = vector.broadcast %c0_i32_2 : i32 to vector<8x128xi32>
    %8 = arith.cmpi eq, %6, %7 : vector<8x128xi32>
    %9 = tpu.iota {dimensions = array<i32: 1>} : vector<8x8xi32>
    %c0_3 = arith.constant 0 : index
    %c0_4 = arith.constant 0 : index
    %10 = vector.load %arg6[%c0_3, %c0_4] : memref<8x128xf32, #tpu.memory_space<vmem>>, vector<8x128xf32>
    %c0_i32_5 = arith.constant 0 : i32
    %11 = vector.broadcast %c0_i32_5 : i32 to vector<8x8xi32>
    %c0_i32_6 = arith.constant 0 : i32
    %12 = arith.index_cast %c0_i32_6 : i32 to index
    %c0_7 = arith.constant 0 : index
    %c0_8 = arith.constant 0 : index
    %13 = vector.load %arg2[%12, %c0_7, %c0_8] : memref<8x8x128xf32, #tpu.memory_space<vmem>>, vector<1x8x128xf32>
    %14 = vector.shape_cast %13 : vector<1x8x128xf32> to vector<8x128xf32>
    %cst_9 = arith.constant 0.000000e+00 : f32
    %15 = vector.broadcast %cst_9 : f32 to vector<8x128xf32>
    %16 = arith.cmpf ole, %14, %15 : vector<8x128xf32>
    %17 = arith.cmpf ogt, %14, %10 : vector<8x128xf32>
    %18 = arith.ori %16, %17 : vector<8x128xi1>
    %19 = arith.mulf %10, %5 : vector<8x128xf32>
    %cst_10 = arith.constant -1.000000e+06 : f32
    %20 = vector.broadcast %cst_10 : f32 to vector<8x128xf32>
    %21 = arith.select %18, %20, %19 : vector<8x128xi1>, vector<8x128xf32>
    %cst_11 = arith.constant -1.000000e+05 : f32
    %22 = vector.broadcast %cst_11 : f32 to vector<8x128xf32>
    %23 = arith.select %8, %22, %21 : vector<8x128xi1>, vector<8x128xf32>
    %cst_12 = arith.constant dense<0xFF800000> : vector<8xf32>
    %24 = vector.multi_reduction <maximumf>, %23, %cst_12 [1] : vector<8x128xf32> to vector<8xf32>
    %25 = vector.shape_cast %24 : vector<8xf32> to vector<8x1xf32>
    %26 = vector.broadcast %25 : vector<8x1xf32> to vector<8x128xf32>
    %27 = arith.cmpf oeq, %23, %26 : vector<8x128xf32>
    %c128_i32 = arith.constant 128 : i32
    %28 = vector.broadcast %c128_i32 : i32 to vector<8x128xi32>
    %29 = arith.select %27, %6, %28 : vector<8x128xi1>, vector<8x128xi32>
    %cst_13 = arith.constant dense<2147483647> : vector<8xi32>
    %30 = vector.multi_reduction <minsi>, %29, %cst_13 [1] : vector<8x128xi32> to vector<8xi32>
    %31 = vector.shape_cast %30 : vector<8xi32> to vector<8x1xi32>
    %32 = vector.broadcast %31 : vector<8x1xi32> to vector<8x128xi32>
    %33 = arith.cmpi eq, %6, %32 : vector<8x128xi32>
    %34 = arith.subf %10, %14 : vector<8x128xf32>
    %35 = arith.select %33, %34, %10 : vector<8x128xi1>, vector<8x128xf32>
    %36 = vector.broadcast %c0_i32_6 : i32 to vector<8x8xi32>
    %37 = arith.cmpi eq, %9, %36 : vector<8x8xi32>
    %38 = vector.shape_cast %31 : vector<8x1xi32> to vector<8x1xi32>
    %39 = vector.broadcast %38 : vector<8x1xi32> to vector<8x8xi32>
    %40 = arith.select %37, %39, %11 : vector<8x8xi1>, vector<8x8xi32>
    %c1_i32 = arith.constant 1 : i32
    %41 = arith.index_cast %c1_i32 : i32 to index
    %c0_14 = arith.constant 0 : index
    %c0_15 = arith.constant 0 : index
    %42 = vector.load %arg2[%41, %c0_14, %c0_15] : memref<8x8x128xf32, #tpu.memory_space<vmem>>, vector<1x8x128xf32>
    %43 = vector.shape_cast %42 : vector<1x8x128xf32> to vector<8x128xf32>
    %cst_16 = arith.constant 0.000000e+00 : f32
    %44 = vector.broadcast %cst_16 : f32 to vector<8x128xf32>
    %45 = arith.cmpf ole, %43, %44 : vector<8x128xf32>
    %46 = arith.cmpf ogt, %43, %35 : vector<8x128xf32>
    %47 = arith.ori %45, %46 : vector<8x128xi1>
    %48 = arith.mulf %35, %5 : vector<8x128xf32>
    %cst_17 = arith.constant -1.000000e+06 : f32
    %49 = vector.broadcast %cst_17 : f32 to vector<8x128xf32>
    %50 = arith.select %47, %49, %48 : vector<8x128xi1>, vector<8x128xf32>
    %cst_18 = arith.constant -1.000000e+05 : f32
    %51 = vector.broadcast %cst_18 : f32 to vector<8x128xf32>
    %52 = arith.select %8, %51, %50 : vector<8x128xi1>, vector<8x128xf32>
    %cst_19 = arith.constant dense<0xFF800000> : vector<8xf32>
    %53 = vector.multi_reduction <maximumf>, %52, %cst_19 [1] : vector<8x128xf32> to vector<8xf32>
    %54 = vector.shape_cast %53 : vector<8xf32> to vector<8x1xf32>
    %55 = vector.broadcast %54 : vector<8x1xf32> to vector<8x128xf32>
    %56 = arith.cmpf oeq, %52, %55 : vector<8x128xf32>
    %c128_i32_20 = arith.constant 128 : i32
    %57 = vector.broadcast %c128_i32_20 : i32 to vector<8x128xi32>
    %58 = arith.select %56, %6, %57 : vector<8x128xi1>, vector<8x128xi32>
    %cst_21 = arith.constant dense<2147483647> : vector<8xi32>
    %59 = vector.multi_reduction <minsi>, %58, %cst_21 [1] : vector<8x128xi32> to vector<8xi32>
    %60 = vector.shape_cast %59 : vector<8xi32> to vector<8x1xi32>
    %61 = vector.broadcast %60 : vector<8x1xi32> to vector<8x128xi32>
    %62 = arith.cmpi eq, %6, %61 : vector<8x128xi32>
    %63 = arith.subf %35, %43 : vector<8x128xf32>
    %64 = arith.select %62, %63, %35 : vector<8x128xi1>, vector<8x128xf32>
    %65 = vector.broadcast %c1_i32 : i32 to vector<8x8xi32>
    %66 = arith.cmpi eq, %9, %65 : vector<8x8xi32>
    %67 = vector.shape_cast %60 : vector<8x1xi32> to vector<8x1xi32>
    %68 = vector.broadcast %67 : vector<8x1xi32> to vector<8x8xi32>
    %69 = arith.select %66, %68, %40 : vector<8x8xi1>, vector<8x8xi32>
    %c2_i32 = arith.constant 2 : i32
    %70 = arith.index_cast %c2_i32 : i32 to index
    %c0_22 = arith.constant 0 : index
    %c0_23 = arith.constant 0 : index
    %71 = vector.load %arg2[%70, %c0_22, %c0_23] : memref<8x8x128xf32, #tpu.memory_space<vmem>>, vector<1x8x128xf32>
    %72 = vector.shape_cast %71 : vector<1x8x128xf32> to vector<8x128xf32>
    %cst_24 = arith.constant 0.000000e+00 : f32
    %73 = vector.broadcast %cst_24 : f32 to vector<8x128xf32>
    %74 = arith.cmpf ole, %72, %73 : vector<8x128xf32>
    %75 = arith.cmpf ogt, %72, %64 : vector<8x128xf32>
    %76 = arith.ori %74, %75 : vector<8x128xi1>
    %77 = arith.mulf %64, %5 : vector<8x128xf32>
    %cst_25 = arith.constant -1.000000e+06 : f32
    %78 = vector.broadcast %cst_25 : f32 to vector<8x128xf32>
    %79 = arith.select %76, %78, %77 : vector<8x128xi1>, vector<8x128xf32>
    %cst_26 = arith.constant -1.000000e+05 : f32
    %80 = vector.broadcast %cst_26 : f32 to vector<8x128xf32>
    %81 = arith.select %8, %80, %79 : vector<8x128xi1>, vector<8x128xf32>
    %cst_27 = arith.constant dense<0xFF800000> : vector<8xf32>
    %82 = vector.multi_reduction <maximumf>, %81, %cst_27 [1] : vector<8x128xf32> to vector<8xf32>
    %83 = vector.shape_cast %82 : vector<8xf32> to vector<8x1xf32>
    %84 = vector.broadcast %83 : vector<8x1xf32> to vector<8x128xf32>
    %85 = arith.cmpf oeq, %81, %84 : vector<8x128xf32>
    %c128_i32_28 = arith.constant 128 : i32
    %86 = vector.broadcast %c128_i32_28 : i32 to vector<8x128xi32>
    %87 = arith.select %85, %6, %86 : vector<8x128xi1>, vector<8x128xi32>
    %cst_29 = arith.constant dense<2147483647> : vector<8xi32>
    %88 = vector.multi_reduction <minsi>, %87, %cst_29 [1] : vector<8x128xi32> to vector<8xi32>
    %89 = vector.shape_cast %88 : vector<8xi32> to vector<8x1xi32>
    %90 = vector.broadcast %89 : vector<8x1xi32> to vector<8x128xi32>
    %91 = arith.cmpi eq, %6, %90 : vector<8x128xi32>
    %92 = arith.subf %64, %72 : vector<8x128xf32>
    %93 = arith.select %91, %92, %64 : vector<8x128xi1>, vector<8x128xf32>
    %94 = vector.broadcast %c2_i32 : i32 to vector<8x8xi32>
    %95 = arith.cmpi eq, %9, %94 : vector<8x8xi32>
    %96 = vector.shape_cast %89 : vector<8x1xi32> to vector<8x1xi32>
    %97 = vector.broadcast %96 : vector<8x1xi32> to vector<8x8xi32>
    %98 = arith.select %95, %97, %69 : vector<8x8xi1>, vector<8x8xi32>
    %c3_i32 = arith.constant 3 : i32
    %99 = arith.index_cast %c3_i32 : i32 to index
    %c0_30 = arith.constant 0 : index
    %c0_31 = arith.constant 0 : index
    %100 = vector.load %arg2[%99, %c0_30, %c0_31] : memref<8x8x128xf32, #tpu.memory_space<vmem>>, vector<1x8x128xf32>
    %101 = vector.shape_cast %100 : vector<1x8x128xf32> to vector<8x128xf32>
    %cst_32 = arith.constant 0.000000e+00 : f32
    %102 = vector.broadcast %cst_32 : f32 to vector<8x128xf32>
    %103 = arith.cmpf ole, %101, %102 : vector<8x128xf32>
    %104 = arith.cmpf ogt, %101, %93 : vector<8x128xf32>
    %105 = arith.ori %103, %104 : vector<8x128xi1>
    %106 = arith.mulf %93, %5 : vector<8x128xf32>
    %cst_33 = arith.constant -1.000000e+06 : f32
    %107 = vector.broadcast %cst_33 : f32 to vector<8x128xf32>
    %108 = arith.select %105, %107, %106 : vector<8x128xi1>, vector<8x128xf32>
    %cst_34 = arith.constant -1.000000e+05 : f32
    %109 = vector.broadcast %cst_34 : f32 to vector<8x128xf32>
    %110 = arith.select %8, %109, %108 : vector<8x128xi1>, vector<8x128xf32>
    %cst_35 = arith.constant dense<0xFF800000> : vector<8xf32>
    %111 = vector.multi_reduction <maximumf>, %110, %cst_35 [1] : vector<8x128xf32> to vector<8xf32>
    %112 = vector.shape_cast %111 : vector<8xf32> to vector<8x1xf32>
    %113 = vector.broadcast %112 : vector<8x1xf32> to vector<8x128xf32>
    %114 = arith.cmpf oeq, %110, %113 : vector<8x128xf32>
    %c128_i32_36 = arith.constant 128 : i32
    %115 = vector.broadcast %c128_i32_36 : i32 to vector<8x128xi32>
    %116 = arith.select %114, %6, %115 : vector<8x128xi1>, vector<8x128xi32>
    %cst_37 = arith.constant dense<2147483647> : vector<8xi32>
    %117 = vector.multi_reduction <minsi>, %116, %cst_37 [1] : vector<8x128xi32> to vector<8xi32>
    %118 = vector.shape_cast %117 : vector<8xi32> to vector<8x1xi32>
    %119 = vector.broadcast %118 : vector<8x1xi32> to vector<8x128xi32>
    %120 = arith.cmpi eq, %6, %119 : vector<8x128xi32>
    %121 = arith.subf %93, %101 : vector<8x128xf32>
    %122 = arith.select %120, %121, %93 : vector<8x128xi1>, vector<8x128xf32>
    %123 = vector.broadcast %c3_i32 : i32 to vector<8x8xi32>
    %124 = arith.cmpi eq, %9, %123 : vector<8x8xi32>
    %125 = vector.shape_cast %118 : vector<8x1xi32> to vector<8x1xi32>
    %126 = vector.broadcast %125 : vector<8x1xi32> to vector<8x8xi32>
    %127 = arith.select %124, %126, %98 : vector<8x8xi1>, vector<8x8xi32>
    %c4_i32 = arith.constant 4 : i32
    %128 = arith.index_cast %c4_i32 : i32 to index
    %c0_38 = arith.constant 0 : index
    %c0_39 = arith.constant 0 : index
    %129 = vector.load %arg2[%128, %c0_38, %c0_39] : memref<8x8x128xf32, #tpu.memory_space<vmem>>, vector<1x8x128xf32>
    %130 = vector.shape_cast %129 : vector<1x8x128xf32> to vector<8x128xf32>
    %cst_40 = arith.constant 0.000000e+00 : f32
    %131 = vector.broadcast %cst_40 : f32 to vector<8x128xf32>
    %132 = arith.cmpf ole, %130, %131 : vector<8x128xf32>
    %133 = arith.cmpf ogt, %130, %122 : vector<8x128xf32>
    %134 = arith.ori %132, %133 : vector<8x128xi1>
    %135 = arith.mulf %122, %5 : vector<8x128xf32>
    %cst_41 = arith.constant -1.000000e+06 : f32
    %136 = vector.broadcast %cst_41 : f32 to vector<8x128xf32>
    %137 = arith.select %134, %136, %135 : vector<8x128xi1>, vector<8x128xf32>
    %cst_42 = arith.constant -1.000000e+05 : f32
    %138 = vector.broadcast %cst_42 : f32 to vector<8x128xf32>
    %139 = arith.select %8, %138, %137 : vector<8x128xi1>, vector<8x128xf32>
    %cst_43 = arith.constant dense<0xFF800000> : vector<8xf32>
    %140 = vector.multi_reduction <maximumf>, %139, %cst_43 [1] : vector<8x128xf32> to vector<8xf32>
    %141 = vector.shape_cast %140 : vector<8xf32> to vector<8x1xf32>
    %142 = vector.broadcast %141 : vector<8x1xf32> to vector<8x128xf32>
    %143 = arith.cmpf oeq, %139, %142 : vector<8x128xf32>
    %c128_i32_44 = arith.constant 128 : i32
    %144 = vector.broadcast %c128_i32_44 : i32 to vector<8x128xi32>
    %145 = arith.select %143, %6, %144 : vector<8x128xi1>, vector<8x128xi32>
    %cst_45 = arith.constant dense<2147483647> : vector<8xi32>
    %146 = vector.multi_reduction <minsi>, %145, %cst_45 [1] : vector<8x128xi32> to vector<8xi32>
    %147 = vector.shape_cast %146 : vector<8xi32> to vector<8x1xi32>
    %148 = vector.broadcast %147 : vector<8x1xi32> to vector<8x128xi32>
    %149 = arith.cmpi eq, %6, %148 : vector<8x128xi32>
    %150 = arith.subf %122, %130 : vector<8x128xf32>
    %151 = arith.select %149, %150, %122 : vector<8x128xi1>, vector<8x128xf32>
    %152 = vector.broadcast %c4_i32 : i32 to vector<8x8xi32>
    %153 = arith.cmpi eq, %9, %152 : vector<8x8xi32>
    %154 = vector.shape_cast %147 : vector<8x1xi32> to vector<8x1xi32>
    %155 = vector.broadcast %154 : vector<8x1xi32> to vector<8x8xi32>
    %156 = arith.select %153, %155, %127 : vector<8x8xi1>, vector<8x8xi32>
    %c5_i32 = arith.constant 5 : i32
    %157 = arith.index_cast %c5_i32 : i32 to index
    %c0_46 = arith.constant 0 : index
    %c0_47 = arith.constant 0 : index
    %158 = vector.load %arg2[%157, %c0_46, %c0_47] : memref<8x8x128xf32, #tpu.memory_space<vmem>>, vector<1x8x128xf32>
    %159 = vector.shape_cast %158 : vector<1x8x128xf32> to vector<8x128xf32>
    %cst_48 = arith.constant 0.000000e+00 : f32
    %160 = vector.broadcast %cst_48 : f32 to vector<8x128xf32>
    %161 = arith.cmpf ole, %159, %160 : vector<8x128xf32>
    %162 = arith.cmpf ogt, %159, %151 : vector<8x128xf32>
    %163 = arith.ori %161, %162 : vector<8x128xi1>
    %164 = arith.mulf %151, %5 : vector<8x128xf32>
    %cst_49 = arith.constant -1.000000e+06 : f32
    %165 = vector.broadcast %cst_49 : f32 to vector<8x128xf32>
    %166 = arith.select %163, %165, %164 : vector<8x128xi1>, vector<8x128xf32>
    %cst_50 = arith.constant -1.000000e+05 : f32
    %167 = vector.broadcast %cst_50 : f32 to vector<8x128xf32>
    %168 = arith.select %8, %167, %166 : vector<8x128xi1>, vector<8x128xf32>
    %cst_51 = arith.constant dense<0xFF800000> : vector<8xf32>
    %169 = vector.multi_reduction <maximumf>, %168, %cst_51 [1] : vector<8x128xf32> to vector<8xf32>
    %170 = vector.shape_cast %169 : vector<8xf32> to vector<8x1xf32>
    %171 = vector.broadcast %170 : vector<8x1xf32> to vector<8x128xf32>
    %172 = arith.cmpf oeq, %168, %171 : vector<8x128xf32>
    %c128_i32_52 = arith.constant 128 : i32
    %173 = vector.broadcast %c128_i32_52 : i32 to vector<8x128xi32>
    %174 = arith.select %172, %6, %173 : vector<8x128xi1>, vector<8x128xi32>
    %cst_53 = arith.constant dense<2147483647> : vector<8xi32>
    %175 = vector.multi_reduction <minsi>, %174, %cst_53 [1] : vector<8x128xi32> to vector<8xi32>
    %176 = vector.shape_cast %175 : vector<8xi32> to vector<8x1xi32>
    %177 = vector.broadcast %176 : vector<8x1xi32> to vector<8x128xi32>
    %178 = arith.cmpi eq, %6, %177 : vector<8x128xi32>
    %179 = arith.subf %151, %159 : vector<8x128xf32>
    %180 = arith.select %178, %179, %151 : vector<8x128xi1>, vector<8x128xf32>
    %181 = vector.broadcast %c5_i32 : i32 to vector<8x8xi32>
    %182 = arith.cmpi eq, %9, %181 : vector<8x8xi32>
    %183 = vector.shape_cast %176 : vector<8x1xi32> to vector<8x1xi32>
    %184 = vector.broadcast %183 : vector<8x1xi32> to vector<8x8xi32>
    %185 = arith.select %182, %184, %156 : vector<8x8xi1>, vector<8x8xi32>
    %c6_i32 = arith.constant 6 : i32
    %186 = arith.index_cast %c6_i32 : i32 to index
    %c0_54 = arith.constant 0 : index
    %c0_55 = arith.constant 0 : index
    %187 = vector.load %arg2[%186, %c0_54, %c0_55] : memref<8x8x128xf32, #tpu.memory_space<vmem>>, vector<1x8x128xf32>
    %188 = vector.shape_cast %187 : vector<1x8x128xf32> to vector<8x128xf32>
    %cst_56 = arith.constant 0.000000e+00 : f32
    %189 = vector.broadcast %cst_56 : f32 to vector<8x128xf32>
    %190 = arith.cmpf ole, %188, %189 : vector<8x128xf32>
    %191 = arith.cmpf ogt, %188, %180 : vector<8x128xf32>
    %192 = arith.ori %190, %191 : vector<8x128xi1>
    %193 = arith.mulf %180, %5 : vector<8x128xf32>
    %cst_57 = arith.constant -1.000000e+06 : f32
    %194 = vector.broadcast %cst_57 : f32 to vector<8x128xf32>
    %195 = arith.select %192, %194, %193 : vector<8x128xi1>, vector<8x128xf32>
    %cst_58 = arith.constant -1.000000e+05 : f32
    %196 = vector.broadcast %cst_58 : f32 to vector<8x128xf32>
    %197 = arith.select %8, %196, %195 : vector<8x128xi1>, vector<8x128xf32>
    %cst_59 = arith.constant dense<0xFF800000> : vector<8xf32>
    %198 = vector.multi_reduction <maximumf>, %197, %cst_59 [1] : vector<8x128xf32> to vector<8xf32>
    %199 = vector.shape_cast %198 : vector<8xf32> to vector<8x1xf32>
    %200 = vector.broadcast %199 : vector<8x1xf32> to vector<8x128xf32>
    %201 = arith.cmpf oeq, %197, %200 : vector<8x128xf32>
    %c128_i32_60 = arith.constant 128 : i32
    %202 = vector.broadcast %c128_i32_60 : i32 to vector<8x128xi32>
    %203 = arith.select %201, %6, %202 : vector<8x128xi1>, vector<8x128xi32>
    %cst_61 = arith.constant dense<2147483647> : vector<8xi32>
    %204 = vector.multi_reduction <minsi>, %203, %cst_61 [1] : vector<8x128xi32> to vector<8xi32>
    %205 = vector.shape_cast %204 : vector<8xi32> to vector<8x1xi32>
    %206 = vector.broadcast %205 : vector<8x1xi32> to vector<8x128xi32>
    %207 = arith.cmpi eq, %6, %206 : vector<8x128xi32>
    %208 = arith.subf %180, %188 : vector<8x128xf32>
    %209 = arith.select %207, %208, %180 : vector<8x128xi1>, vector<8x128xf32>
    %210 = vector.broadcast %c6_i32 : i32 to vector<8x8xi32>
    %211 = arith.cmpi eq, %9, %210 : vector<8x8xi32>
    %212 = vector.shape_cast %205 : vector<8x1xi32> to vector<8x1xi32>
    %213 = vector.broadcast %212 : vector<8x1xi32> to vector<8x8xi32>
    %214 = arith.select %211, %213, %185 : vector<8x8xi1>, vector<8x8xi32>
    %c7_i32 = arith.constant 7 : i32
    %215 = arith.index_cast %c7_i32 : i32 to index
    %c0_62 = arith.constant 0 : index
    %c0_63 = arith.constant 0 : index
    %216 = vector.load %arg2[%215, %c0_62, %c0_63] : memref<8x8x128xf32, #tpu.memory_space<vmem>>, vector<1x8x128xf32>
    %217 = vector.shape_cast %216 : vector<1x8x128xf32> to vector<8x128xf32>
    %cst_64 = arith.constant 0.000000e+00 : f32
    %218 = vector.broadcast %cst_64 : f32 to vector<8x128xf32>
    %219 = arith.cmpf ole, %217, %218 : vector<8x128xf32>
    %220 = arith.cmpf ogt, %217, %209 : vector<8x128xf32>
    %221 = arith.ori %219, %220 : vector<8x128xi1>
    %222 = arith.mulf %209, %5 : vector<8x128xf32>
    %cst_65 = arith.constant -1.000000e+06 : f32
    %223 = vector.broadcast %cst_65 : f32 to vector<8x128xf32>
    %224 = arith.select %221, %223, %222 : vector<8x128xi1>, vector<8x128xf32>
    %cst_66 = arith.constant -1.000000e+05 : f32
    %225 = vector.broadcast %cst_66 : f32 to vector<8x128xf32>
    %226 = arith.select %8, %225, %224 : vector<8x128xi1>, vector<8x128xf32>
    %cst_67 = arith.constant dense<0xFF800000> : vector<8xf32>
    %227 = vector.multi_reduction <maximumf>, %226, %cst_67 [1] : vector<8x128xf32> to vector<8xf32>
    %228 = vector.shape_cast %227 : vector<8xf32> to vector<8x1xf32>
    %229 = vector.broadcast %228 : vector<8x1xf32> to vector<8x128xf32>
    %230 = arith.cmpf oeq, %226, %229 : vector<8x128xf32>
    %c128_i32_68 = arith.constant 128 : i32
    %231 = vector.broadcast %c128_i32_68 : i32 to vector<8x128xi32>
    %232 = arith.select %230, %6, %231 : vector<8x128xi1>, vector<8x128xi32>
    %cst_69 = arith.constant dense<2147483647> : vector<8xi32>
    %233 = vector.multi_reduction <minsi>, %232, %cst_69 [1] : vector<8x128xi32> to vector<8xi32>
    %234 = vector.shape_cast %233 : vector<8xi32> to vector<8x1xi32>
    %235 = vector.broadcast %234 : vector<8x1xi32> to vector<8x128xi32>
    %236 = arith.cmpi eq, %6, %235 : vector<8x128xi32>
    %237 = arith.subf %209, %217 : vector<8x128xf32>
    %238 = arith.select %236, %237, %209 : vector<8x128xi1>, vector<8x128xf32>
    %239 = vector.broadcast %c7_i32 : i32 to vector<8x8xi32>
    %240 = arith.cmpi eq, %9, %239 : vector<8x8xi32>
    %241 = vector.shape_cast %234 : vector<8x1xi32> to vector<8x1xi32>
    %242 = vector.broadcast %241 : vector<8x1xi32> to vector<8x8xi32>
    %243 = arith.select %240, %242, %214 : vector<8x8xi1>, vector<8x8xi32>
    %c8_i32 = arith.constant 8 : i32
    %c0_70 = arith.constant 0 : index
    %c0_71 = arith.constant 0 : index
    %244 = vector.load %arg6[%c0_70, %c0_71] : memref<8x128xf32, #tpu.memory_space<vmem>>, vector<8x128xf32>
    tpu.vector_store %arg6[%c0_70, %c0_71], %238 {strides = array<i32>} : memref<8x128xf32, #tpu.memory_space<vmem>>, vector<8x128xf32>,
    %c0_72 = arith.constant 0 : index
    %c0_73 = arith.constant 0 : index
    %245 = vector.load %arg5[%c0_72, %c0_73] : memref<8x8xi32, #tpu.memory_space<vmem>>, vector<8x8xi32>
    tpu.vector_store %arg5[%c0_72, %c0_73], %243 {strides = array<i32>} : memref<8x8xi32, #tpu.memory_space<vmem>>, vector<8x8xi32>,
    %c0_i32_74 = arith.constant 0 : i32
    %246 = arith.cmpi eq, %arg1, %c0_i32_74 : i32
    %247 = arith.extui %246 : i1 to i32
    %c0_i32_75 = arith.constant 0 : i32
    %248 = arith.cmpi ne, %247, %c0_i32_75 : i32
    scf.if %248 {
      %249 = arith.subf %238, %3 : vector<8x128xf32>
      %cst_76 = arith.constant dense<0.000000e+00> : vector<8xf32>
      %250 = vector.multi_reduction <add>, %249, %cst_76 [1] : vector<8x128xf32> to vector<8xf32>
      %251 = vector.shape_cast %250 : vector<8xf32> to vector<8x1xf32>
      %c0_77 = arith.constant 0 : index
      %c0_78 = arith.constant 0 : index
      %252 = vector.load %arg4[%c0_77, %c0_78] : memref<8x1xf32, #tpu.memory_space<vmem>>, vector<8x1xf32>
      tpu.vector_store %arg4[%c0_77, %c0_78], %251 {strides = array<i32>} : memref<8x1xf32, #tpu.memory_space<vmem>>, vector<8x1xf32>,
    } else {
    }
    return
  }
  func.func @transform_0(%arg0: i32, %arg1: i32) -> (i32, i32, i32) {
    %c0_i32 = arith.constant 0 : i32
    %c0_i32_0 = arith.constant 0 : i32
    return %arg1, %arg0, %c0_i32 : i32, i32, i32
  }
  func.func @transform_1(%arg0: i32, %arg1: i32) -> (i32, i32) {
    %c0_i32 = arith.constant 0 : i32
    %c0_i32_0 = arith.constant 0 : i32
    return %arg0, %c0_i32 : i32, i32
  }
  func.func @transform_2(%arg0: i32, %arg1: i32) -> (i32, i32) {
    %c0_i32 = arith.constant 0 : i32
    %c0_i32_0 = arith.constant 0 : i32
    return %arg0, %c0_i32 : i32, i32
  }
  func.func @transform_3(%arg0: i32, %arg1: i32) -> (i32, i32) {
    %c0_i32 = arith.constant 0 : i32
    return %arg0, %arg1 : i32, i32
  }
}

</mosaic_0001>

<llo_original>
// kernel: tpu_custom_call.1
$region0: #{tpu_custom_call.1}
  #allocation0 [shape = 'u32[]', space=smem, size = 0x4, offset = 0x4, fixed_abs, tag = 'smem constant byte address 0x4 - core index']
  #allocation1 [shape = 'u32[144,128]{1,0:T(1,128)}', space=vmem, size = 0x12000, scoped, tag = 'internal scratch']
  #allocation2 [shape = 'f32[8,128]{1,0:T(8,128)}', space=vmem, size = 0x1000, scoped, tag = 'scratch operand']
  %s0 = inlined_call_operand.hbm [shape: f32[8,8,128], index: 0, kind: input, shape index: {}]
  %s1 = inlined_call_operand.hbm [shape: f32[8,128], index: 1, kind: input, shape index: {}]
  %s2 = inlined_call_operand.vmem [shape: f32[8,1], index: 2, kind: output, shape index: {0}]
  %s3 = inlined_call_operand.hbm [shape: s32[8,8], index: 3, kind: output, shape index: {1}]
  %4 = xla_tuple %s2, %s3
  %s5 = sld [smem:[#allocation0]]
  $region42: #{tpu_custom_call.1} parent=0
    _
  %s7 = ssub.s32 1, %s5
  %s8 = scalar_select 0, %s7, %s5
  $region1: #{tpu_custom_call.1} parent=0
    #allocation3 [shape = 'u8[32768]{0}', space=vmem, size = 0x8000, scoped, tag = 'input window, operand 0, single buffered']
    #allocation4 [shape = 's32[1]{0}', space=sflag, size = 0x4, scoped, tag = 'scoped memory for tpu_custom_call.1']
    #allocation5 [shape = 's32[1]{0}', space=sflag, size = 0x4, scoped, tag = 'scoped memory for tpu_custom_call.1']
    #allocation6 [shape = 'u8[4096]{0}', space=vmem, size = 0x1000, scoped, tag = 'input window, operand 1, single buffered']
    #allocation7 [shape = 's32[1]{0}', space=sflag, size = 0x4, scoped, tag = 'scoped memory for tpu_custom_call.1']
    #allocation8 [shape = 'u8[4096]{0}', space=vmem, size = 0x1000, scoped, tag = 'output window, operand 1, single buffered']
    %9 = vsyncpa [#allocation4], 0
    %10 = vsyncpa [#allocation7], 0
    %11 = vsyncpa [#allocation5], 0
    // Predicated region
    $region2: #{tpu_custom_call.1} parent=1 // pred_check
      _
    $region3: #{tpu_custom_call.1} parent=1 // pred_check_branch
      %13 = sbr.rel (0) target = $region5
    $region4: #{tpu_custom_call.1} parent=1 // pred_region
      %s15 = ssub.s32 1024, 1024
      %16 = vsyncadd [#allocation4], %s15
      %s17 = sshll.u32 [#allocation3], 4
      %s18 = int_to_ptr.vmem [resolvable:$true] %s17
      %23 = dma.hbm_to_vmem [thread:$0]  %s0, 1024, %s18, [#allocation4], 128, 128, 8
    $region5: #{tpu_custom_call.1} parent=1 // pred_fallthru
      _
    // Predicated region
    $region6: #{tpu_custom_call.1} parent=1 // pred_check
      _
    $region7: #{tpu_custom_call.1} parent=1 // pred_check_branch
      %25 = sbr.rel (0) target = $region9
    $region8: #{tpu_custom_call.1} parent=1 // pred_region
      %s27 = ssub.s32 128, 128
      %28 = vsyncadd [#allocation7], %s27
      %s30 = sshll.u32 [#allocation6], 4
      %s31 = int_to_ptr.vmem [resolvable:$true] %s30
      %33 = dma.hbm_to_vmem [thread:$0]  %s1, 128, %s31, [#allocation7]
    $region9: #{tpu_custom_call.1} parent=1 // pred_fallthru
      _
    // Predicated region
    $region10: #{tpu_custom_call.1} parent=1 // pred_check
      _
    $region11: #{tpu_custom_call.1} parent=1 // pred_check_branch
      %35 = sbr.rel (0) target = $region13
    $region12: #{tpu_custom_call.1} parent=1 // pred_region
      %36 = dma.done [#allocation4], 1024
    $region13: #{tpu_custom_call.1} parent=1 // pred_fallthru
      _
    // Predicated region
    $region14: #{tpu_custom_call.1} parent=1 // pred_check
      _
    $region15: #{tpu_custom_call.1} parent=1 // pred_check_branch
      %38 = sbr.rel (0) target = $region17
    $region16: #{tpu_custom_call.1} parent=1 // pred_region
      %39 = dma.done [#allocation7], 128
    $region17: #{tpu_custom_call.1} parent=1 // pred_fallthru
      _
    %p40 = scmp.eq.s32.totalorder 0, 0
    // Predicated region
    $region18: #{tpu_custom_call.1} parent=1 // pred_check
      %p41 = pneg %p40
    $region19: #{tpu_custom_call.1} parent=1 // pred_check_branch
      %43 = sbr.rel (%p41) target = $region21
    $region20: #{tpu_custom_call.1} parent=1 // pred_region
      %v44 = vld [vmem:[#allocation6] sm:$0xff]
      %45 = vst [vmem:[#allocation2] sm:$0xff] %v44
    $region21: #{tpu_custom_call.1} parent=1 // pred_fallthru
      _
    %v46 = vld [vmem:[#allocation6] sm:$0xff]
    %v47 = vrcp.pop %v46
    %v48 = vmul.f32 1.0, %v47
    %v49 = vlaneseq
    %v50 = vand.u32 %v49, 127
    %vm51 = vcmp.eq.s32.totalorder %v50, 0
    %v52 = vld [vmem:[#allocation2] sm:$0xff]
    %v53 = vld [vmem:[#allocation3] sm:$0xff]
    %vm54 = vcmp.le.f32.partialorder %v53, 0.0
    %vm55 = vcmp.gt.f32.partialorder %v53, %v52
    %vm56 = vmor %vm54, %vm55
    %v57 = vmul.f32 %v52, %v48
    %v58 = vsel %vm56, -1000000.0, %v57
    %v59 = vsel %vm51, -100000.0, %v58
    %60 = vmax.xlane.f32.xlu0 %v59
    %v61 = vpop.xlane.xlu0 %60
    %vm62 = vcmp.eq.f32.partialorder %v59, %v61
    %v63 = vsel %vm62, %v50, 128
    %v64 = vand.u32 %v63, 65535
    %v65 = vshra.s32 %v63, 16
    %v66 = vcvt.s32.f32 %v64
    %v67 = vcvt.s32.f32 %v65
    %68 = vmin.xlane.f32.xlu0 %v67
    %v69 = vpop.xlane.xlu0 %68
    %vm70 = vcmp.eq.f32.partialorder %v67, %v69
    %v71 = vsel %vm70, %v66, inf
    %72 = vmin.xlane.f32.xlu0 %v71
    %v73 = vpop.xlane.xlu0 %72
    %v74 = vcvt.f32.s32 %v73
    %v75 = vcvt.f32.s32 %v69
    %v76 = vshll.u32 %v75, 16
    %v77 = vadd.s32 %v76, %v74
    %vm78 = vcmp.eq.s32.totalorder %v50, %v77
    %v79 = vsub.f32 %v52, %v53
    %v80 = vsel %vm78, %v79, %v52
    %v81 = vsel %vm51, %v77, 0
    %s82 = scalar_lea.vmem [#allocation3], 8
    %v83 = vld [vmem:[%s82] sm:$0xff]
    %vm84 = vcmp.le.f32.partialorder %v83, 0.0
    %vm85 = vcmp.gt.f32.partialorder %v83, %v80
    %vm86 = vmor %vm84, %vm85
    %v87 = vmul.f32 %v80, %v48
    %v88 = vsel %vm86, -1000000.0, %v87
    %v89 = vsel %vm51, -100000.0, %v88
    %90 = vmax.xlane.f32.xlu0 %v89
    %v91 = vpop.xlane.xlu0 %90
    %vm92 = vcmp.eq.f32.partialorder %v89, %v91
    %v93 = vsel %vm92, %v50, 128
    %v94 = vand.u32 %v93, 65535
    %v95 = vshra.s32 %v93, 16
    %v96 = vcvt.s32.f32 %v94
    %v97 = vcvt.s32.f32 %v95
    %98 = vmin.xlane.f32.xlu0 %v97
    %v99 = vpop.xlane.xlu0 %98
    %vm100 = vcmp.eq.f32.partialorder %v97, %v99
    %v101 = vsel %vm100, %v96, inf
    %102 = vmin.xlane.f32.xlu0 %v101
    %v103 = vpop.xlane.xlu0 %102
    %v104 = vcvt.f32.s32 %v103
    %v105 = vcvt.f32.s32 %v99
    %v106 = vshll.u32 %v105, 16
    %v107 = vadd.s32 %v106, %v104
    %vm108 = vcmp.eq.s32.totalorder %v50, %v107
    %v109 = vsub.f32 %v80, %v83
    %v110 = vsel %vm108, %v109, %v80
    %vm111 = vcmp.eq.s32.totalorder %v50, 1
    %v112 = vsel %vm111, %v107, %v81
    %s113 = scalar_lea.vmem [#allocation3], 16
    %v114 = vld [vmem:[%s113] sm:$0xff]
    %vm115 = vcmp.le.f32.partialorder %v114, 0.0
    %vm116 = vcmp.gt.f32.partialorder %v114, %v110
    %vm117 = vmor %vm115, %vm116
    %v118 = vmul.f32 %v110, %v48
    %v119 = vsel %vm117, -1000000.0, %v118
    %v120 = vsel %vm51, -100000.0, %v119
    %121 = vmax.xlane.f32.xlu0 %v120
    %v122 = vpop.xlane.xlu0 %121
    %vm123 = vcmp.eq.f32.partialorder %v120, %v122
    %v124 = vsel %vm123, %v50, 128
    %v125 = vand.u32 %v124, 65535
    %v126 = vshra.s32 %v124, 16
    %v127 = vcvt.s32.f32 %v125
    %v128 = vcvt.s32.f32 %v126
    %129 = vmin.xlane.f32.xlu0 %v128
    %v130 = vpop.xlane.xlu0 %129
    %vm131 = vcmp.eq.f32.partialorder %v128, %v130
    %v132 = vsel %vm131, %v127, inf
    %133 = vmin.xlane.f32.xlu0 %v132
    %v134 = vpop.xlane.xlu0 %133
    %v135 = vcvt.f32.s32 %v134
    %v136 = vcvt.f32.s32 %v130
    %v137 = vshll.u32 %v136, 16
    %v138 = vadd.s32 %v137, %v135
    %vm139 = vcmp.eq.s32.totalorder %v50, %v138
    %v140 = vsub.f32 %v110, %v114
    %v141 = vsel %vm139, %v140, %v110
    %vm142 = vcmp.eq.s32.totalorder %v50, 2
    %v143 = vsel %vm142, %v138, %v112
    %s144 = scalar_lea.vmem [#allocation3], 24
    %v145 = vld [vmem:[%s144] sm:$0xff]
    %vm146 = vcmp.le.f32.partialorder %v145, 0.0
    %vm147 = vcmp.gt.f32.partialorder %v145, %v141
    %vm148 = vmor %vm146, %vm147
    %v149 = vmul.f32 %v141, %v48
    %v150 = vsel %vm148, -1000000.0, %v149
    %v151 = vsel %vm51, -100000.0, %v150
    %152 = vmax.xlane.f32.xlu0 %v151
    %v153 = vpop.xlane.xlu0 %152
    %vm154 = vcmp.eq.f32.partialorder %v151, %v153
    %v155 = vsel %vm154, %v50, 128
    %v156 = vand.u32 %v155, 65535
    %v157 = vshra.s32 %v155, 16
    %v158 = vcvt.s32.f32 %v156
    %v159 = vcvt.s32.f32 %v157
    %160 = vmin.xlane.f32.xlu0 %v159
    %v161 = vpop.xlane.xlu0 %160
    %vm162 = vcmp.eq.f32.partialorder %v159, %v161
    %v163 = vsel %vm162, %v158, inf
    %164 = vmin.xlane.f32.xlu0 %v163
    %v165 = vpop.xlane.xlu0 %164
    %v166 = vcvt.f32.s32 %v165
    %v167 = vcvt.f32.s32 %v161
    %v168 = vshll.u32 %v167, 16
    %v169 = vadd.s32 %v168, %v166
    %vm170 = vcmp.eq.s32.totalorder %v50, %v169
    %v171 = vsub.f32 %v141, %v145
    %v172 = vsel %vm170, %v171, %v141
    %vm173 = vcmp.eq.s32.totalorder %v50, 3
    %v174 = vsel %vm173, %v169, %v143
    %s175 = scalar_lea.vmem [#allocation3], 32
    %v176 = vld [vmem:[%s175] sm:$0xff]
    %vm177 = vcmp.le.f32.partialorder %v176, 0.0
    %vm178 = vcmp.gt.f32.partialorder %v176, %v172
    %vm179 = vmor %vm177, %vm178
    %v180 = vmul.f32 %v172, %v48
    %v181 = vsel %vm179, -1000000.0, %v180
    %v182 = vsel %vm51, -100000.0, %v181
    %183 = vmax.xlane.f32.xlu0 %v182
    %v184 = vpop.xlane.xlu0 %183
    %vm185 = vcmp.eq.f32.partialorder %v182, %v184
    %v186 = vsel %vm185, %v50, 128
    %v187 = vand.u32 %v186, 65535
    %v188 = vshra.s32 %v186, 16
    %v189 = vcvt.s32.f32 %v187
    %v190 = vcvt.s32.f32 %v188
    %191 = vmin.xlane.f32.xlu0 %v190
    %v192 = vpop.xlane.xlu0 %191
    %vm193 = vcmp.eq.f32.partialorder %v190, %v192
    %v194 = vsel %vm193, %v189, inf
    %195 = vmin.xlane.f32.xlu0 %v194
    %v196 = vpop.xlane.xlu0 %195
    %v197 = vcvt.f32.s32 %v196
    %v198 = vcvt.f32.s32 %v192
    %v199 = vshll.u32 %v198, 16
    %v200 = vadd.s32 %v199, %v197
    %vm201 = vcmp.eq.s32.totalorder %v50, %v200
    %v202 = vsub.f32 %v172, %v176
    %v203 = vsel %vm201, %v202, %v172
    %vm204 = vcmp.eq.s32.totalorder %v50, 4
    %v205 = vsel %vm204, %v200, %v174
    %s206 = scalar_lea.vmem [#allocation3], 40
    %v207 = vld [vmem:[%s206] sm:$0xff]
    %vm208 = vcmp.le.f32.partialorder %v207, 0.0
    %vm209 = vcmp.gt.f32.partialorder %v207, %v203
    %vm210 = vmor %vm208, %vm209
    %v211 = vmul.f32 %v203, %v48
    %v212 = vsel %vm210, -1000000.0, %v211
    %v213 = vsel %vm51, -100000.0, %v212
    %214 = vmax.xlane.f32.xlu0 %v213
    %v215 = vpop.xlane.xlu0 %214
    %vm216 = vcmp.eq.f32.partialorder %v213, %v215
    %v217 = vsel %vm216, %v50, 128
    %v218 = vand.u32 %v217, 65535
    %v219 = vshra.s32 %v217, 16
    %v220 = vcvt.s32.f32 %v218
    %v221 = vcvt.s32.f32 %v219
    %222 = vmin.xlane.f32.xlu0 %v221
    %v223 = vpop.xlane.xlu0 %222
    %vm224 = vcmp.eq.f32.partialorder %v221, %v223
    %v225 = vsel %vm224, %v220, inf
    %226 = vmin.xlane.f32.xlu0 %v225
    %v227 = vpop.xlane.xlu0 %226
    %v228 = vcvt.f32.s32 %v227
    %v229 = vcvt.f32.s32 %v223
    %v230 = vshll.u32 %v229, 16
    %v231 = vadd.s32 %v230, %v228
    %vm232 = vcmp.eq.s32.totalorder %v50, %v231
    %v233 = vsub.f32 %v203, %v207
    %v234 = vsel %vm232, %v233, %v203
    %vm235 = vcmp.eq.s32.totalorder %v50, 5
    %v236 = vsel %vm235, %v231, %v205
    %s237 = scalar_lea.vmem [#allocation3], 48
    %v238 = vld [vmem:[%s237] sm:$0xff]
    %vm239 = vcmp.le.f32.partialorder %v238, 0.0
    %vm240 = vcmp.gt.f32.partialorder %v238, %v234
    %vm241 = vmor %vm239, %vm240
    %v242 = vmul.f32 %v234, %v48
    %v243 = vsel %vm241, -1000000.0, %v242
    %v244 = vsel %vm51, -100000.0, %v243
    %245 = vmax.xlane.f32.xlu0 %v244
    %v246 = vpop.xlane.xlu0 %245
    %vm247 = vcmp.eq.f32.partialorder %v244, %v246
    %v248 = vsel %vm247, %v50, 128
    %v249 = vand.u32 %v248, 65535
    %v250 = vshra.s32 %v248, 16
    %v251 = vcvt.s32.f32 %v249
    %v252 = vcvt.s32.f32 %v250
    %253 = vmin.xlane.f32.xlu0 %v252
    %v254 = vpop.xlane.xlu0 %253
    %vm255 = vcmp.eq.f32.partialorder %v252, %v254
    %v256 = vsel %vm255, %v251, inf
    %257 = vmin.xlane.f32.xlu0 %v256
    %v258 = vpop.xlane.xlu0 %257
    %v259 = vcvt.f32.s32 %v258
    %v260 = vcvt.f32.s32 %v254
    %v261 = vshll.u32 %v260, 16
    %v262 = vadd.s32 %v261, %v259
    %vm263 = vcmp.eq.s32.totalorder %v50, %v262
    %v264 = vsub.f32 %v234, %v238
    %v265 = vsel %vm263, %v264, %v234
    %vm266 = vcmp.eq.s32.totalorder %v50, 6
    %v267 = vsel %vm266, %v262, %v236
    %s268 = scalar_lea.vmem [#allocation3], 56
    %v269 = vld [vmem:[%s268] sm:$0xff]
    %vm270 = vcmp.le.f32.partialorder %v269, 0.0
    %vm271 = vcmp.gt.f32.partialorder %v269, %v265
    %vm272 = vmor %vm270, %vm271
    %v273 = vmul.f32 %v265, %v48
    %v274 = vsel %vm272, -1000000.0, %v273
    %v275 = vsel %vm51, -100000.0, %v274
    %276 = vmax.xlane.f32.xlu0 %v275
    %v277 = vpop.xlane.xlu0 %276
    %vm278 = vcmp.eq.f32.partialorder %v275, %v277
    %v279 = vsel %vm278, %v50, 128
    %v280 = vand.u32 %v279, 65535
    %v281 = vshra.s32 %v279, 16
    %v282 = vcvt.s32.f32 %v280
    %v283 = vcvt.s32.f32 %v281
    %284 = vmin.xlane.f32.xlu0 %v283
    %v285 = vpop.xlane.xlu0 %284
    %vm286 = vcmp.eq.f32.partialorder %v283, %v285
    %v287 = vsel %vm286, %v282, inf
    %288 = vmin.xlane.f32.xlu0 %v287
    %v289 = vpop.xlane.xlu0 %288
    %v290 = vcvt.f32.s32 %v289
    %v291 = vcvt.f32.s32 %v285
    %v292 = vshll.u32 %v291, 16
    %v293 = vadd.s32 %v292, %v290
    %vm294 = vcmp.eq.s32.totalorder %v50, %v293
    %v295 = vsub.f32 %v265, %v269
    %v296 = vsel %vm294, %v295, %v265
    %vm297 = vcmp.eq.s32.totalorder %v50, 7
    %v298 = vsel %vm297, %v293, %v267
    %299 = vst [vmem:[#allocation2] sm:$0xff] %v296
    %vm300 = vcmask 64512
    %301 = vst.msk [vmem:[#allocation8] sm:$0xff] %vm300, %v298
    // Predicated region
    $region22: #{tpu_custom_call.1} parent=1 // pred_check
      %p302 = pneg %p40
    $region23: #{tpu_custom_call.1} parent=1 // pred_check_branch
      %304 = sbr.rel (%p302) target = $region25
    $region24: #{tpu_custom_call.1} parent=1 // pred_region
      %v305 = vsub.f32 %v296, %v46
      %306 = vadd.xlane.f32.xlu0 %v305
      %v307 = vpop.xlane.xlu0 %306
      %vm308 = vcmask 7168
      %309 = vst.msk [vmem:[%s2] sm:$0xff] %vm308, %v307
    $region25: #{tpu_custom_call.1} parent=1 // pred_fallthru
      _
    // Predicated region
    $region26: #{tpu_custom_call.1} parent=1 // pred_check
      _
    $region27: #{tpu_custom_call.1} parent=1 // pred_check_branch
      %311 = sbr.rel (0) target = $region29
    $region28: #{tpu_custom_call.1} parent=1 // pred_region
      _
    $region29: #{tpu_custom_call.1} parent=1 // pred_fallthru
      _
    // Predicated region
    $region30: #{tpu_custom_call.1} parent=1 // pred_check
      _
    $region31: #{tpu_custom_call.1} parent=1 // pred_check_branch
      %313 = sbr.rel (0) target = $region33
    $region32: #{tpu_custom_call.1} parent=1 // pred_region
      %s315 = ssub.s32 128, 128
      %316 = vsyncadd [#allocation5], %s315
      %s318 = sshll.u32 [#allocation8], 4
      %s319 = int_to_ptr.vmem [resolvable:$true] %s318
      %321 = dma.vmem_to_hbm [thread:$0]  %s319, 128, %s3, [#allocation5]
    $region33: #{tpu_custom_call.1} parent=1 // pred_fallthru
      _
    // Predicated region
    $region34: #{tpu_custom_call.1} parent=1 // pred_check
      _
    $region35: #{tpu_custom_call.1} parent=1 // pred_check_branch
      %323 = sbr.rel (0) target = $region37
    $region36: #{tpu_custom_call.1} parent=1 // pred_region
      _
    $region37: #{tpu_custom_call.1} parent=1 // pred_fallthru
      _
    // Predicated region
    $region38: #{tpu_custom_call.1} parent=1 // pred_check
      _
    $region39: #{tpu_custom_call.1} parent=1 // pred_check_branch
      %325 = sbr.rel (0) target = $region41
    $region40: #{tpu_custom_call.1} parent=1 // pred_region
      %326 = dma.done [#allocation5], 128
    $region41: #{tpu_custom_call.1} parent=1 // pred_fallthru
      _
    %327 = vsyncpa [#allocation4], 1
    %328 = vsyncpa [#allocation7], 1
    %329 = vsyncpa [#allocation5], 1

</llo_original>
